<compile_context>
chip_gen: v6e
topology: v6e:2x2x1
jax: 0.10.0
libtpu: 0.0.40
codegen_flags: <defaults>
</compile_context>

<pallas_src>
import functools

import jax
import jax.numpy as jnp
from jax.experimental import pallas as pl
from jax.experimental.pallas import tpu as pltpu

LANE = 128      # TPU lane width
SUBLANE = 16    # batch-row tile quantum (bf16 sublane packing)
HID1 = 128
HID2 = 64


def _round_up(x, m):
    return ((x + m - 1) // m) * m


def qnetwork_kernel(x_ref, w1_ref, b1_ref, w2_ref, b2_ref, w3_ref, b3_ref,
                    out_ref):
    """Fused forward: relu(x@W1+b1) -> relu(.@W2+b2) -> .@W3+b3.

    x arrives f32 and is cast to bf16 in-kernel (free on the VPU, hidden under
    the input DMA); all matmuls accumulate in f32.
    """
    x = x_ref[...].astype(jnp.bfloat16)                             # (TILE_B, S)
    h1 = jnp.dot(x, w1_ref[...], preferred_element_type=jnp.float32) + b1_ref[...]
    h1 = jnp.maximum(h1, 0.0).astype(jnp.bfloat16)                  # (TILE_B, 128)
    h2 = jnp.dot(h1, w2_ref[...], preferred_element_type=jnp.float32) + b2_ref[...]
    h2 = jnp.maximum(h2, 0.0).astype(jnp.bfloat16)                  # (TILE_B, 128) padded
    out = jnp.dot(h2, w3_ref[...], preferred_element_type=jnp.float32) + b3_ref[...]
    out_ref[...] = out.astype(out_ref.dtype)                        # (TILE_B, action_size)


def init_params(key, state_size, action_size):
    """Deterministic init mimicking PyTorch nn.Linear default U(-1/sqrt(fan_in), ...).

    Stored as (in, out) f32, unpadded (reference layout).
    """
    def linear(key, fan_in, fan_out):
        kw, kb = jax.random.split(key)
        bound = 1.0 / jnp.sqrt(float(fan_in))
        w = jax.random.uniform(kw, (fan_in, fan_out), jnp.float32, -bound, bound)
        b = jax.random.uniform(kb, (1, fan_out), jnp.float32, -bound, bound)
        return w, b

    k1, k2, k3 = jax.random.split(key, 3)
    w1, b1 = linear(k1, state_size, HID1)
    w2, b2 = linear(k2, HID1, HID2)
    w3, b3 = linear(k3, HID2, action_size)
    return dict(w1=w1, b1=b1, w2=w2, b2=b2, w3=w3, b3=b3)


def prepare_params(params):
    """One-time conversion to kernel layout: bf16 weights, f32 biases.

    Only the hidden-2 contraction dim is zero-padded 64->128 (lane-dense h2
    intermediate); the padded columns stay 0 through ReLU and contribute
    nothing to layer 3. Layer-3's output dim stays `action_size` so the kernel
    writes only useful Q-values.
    """
    w1, b1 = params["w1"], params["b1"]
    w2, b2 = params["w2"], params["b2"]
    w3, b3 = params["w3"], params["b3"]
    action_size = w3.shape[1]

    hid2_p = _round_up(HID2, LANE)          # 64 -> 128

    w2p = jnp.zeros((HID1, hid2_p), jnp.float32).at[:, :HID2].set(w2)
    b2p = jnp.zeros((1, hid2_p), jnp.float32).at[:, :HID2].set(b2)
    w3p = jnp.zeros((hid2_p, action_size), jnp.float32).at[:HID2, :].set(w3)

    return dict(
        w1=w1.astype(jnp.bfloat16), b1=b1.astype(jnp.float32),
        w2=w2p.astype(jnp.bfloat16), b2=b2p,
        w3=w3p.astype(jnp.bfloat16), b3=b3.astype(jnp.float32),
    )


def _qnetwork_forward_impl(state, kparams, *, max_tile_b=1024):
    """state: (B, state_size) f32; kparams: output of prepare_params()."""
    B, S = state.shape
    w1, b1 = kparams["w1"], kparams["b1"]
    w2, b2 = kparams["w2"], kparams["b2"]
    w3, b3 = kparams["w3"], kparams["b3"]
    hid2_p = w2.shape[1]
    action_size = w3.shape[1]

    # Balanced batch tiling: minimize padding waste, and guarantee >= 2 grid
    # steps whenever the batch allows it so v7x can shard the "parallel" axis
    # across its two TensorCores (no-op on v5e/v6e).
    n_tiles = pl.cdiv(B, max_tile_b)
    if B >= 2 * SUBLANE:
        n_tiles = max(n_tiles, 2)
    tile_b = _round_up(pl.cdiv(B, n_tiles), SUBLANE)
    padded_b = _round_up(B, tile_b)

    x = state
    if padded_b != B:
        x = jnp.pad(x, ((0, padded_b - B), (0, 0)))

    grid = (padded_b // tile_b,)

    out = pl.pallas_call(
        qnetwork_kernel,
        out_shape=jax.ShapeDtypeStruct((padded_b, action_size), jnp.float32),
        grid=grid,
        in_specs=[
            pl.BlockSpec((tile_b, S), lambda i: (i, 0)),       # state tile (pipelined)
            pl.BlockSpec((S, HID1), lambda i: (0, 0)),         # weights: VMEM-resident
            pl.BlockSpec((1, HID1), lambda i: (0, 0)),
            pl.BlockSpec((HID1, hid2_p), lambda i: (0, 0)),
            pl.BlockSpec((1, hid2_p), lambda i: (0, 0)),
            pl.BlockSpec((hid2_p, action_size), lambda i: (0, 0)),
            pl.BlockSpec((1, action_size), lambda i: (0, 0)),
        ],
        out_specs=pl.BlockSpec((tile_b, action_size), lambda i: (i, 0)),
        compiler_params=pltpu.CompilerParams(
            dimension_semantics=("parallel",)),                # v7x dual-TC sharding
    )(x, w1, b1, w2, b2, w3, b3)

    # Drop batch-padding rows (fused under jit with the kernel launch).
    return out[:B]


# jit so the (rare) batch pad and the output row-slice fuse around the kernel.
qnetwork_forward = jax.jit(_qnetwork_forward_impl, static_argnames=("max_tile_b",))


def qnetwork_reference(state, params):
    """Pure-JAX f32 reference for correctness check."""
    h1 = jnp.maximum(state @ params["w1"] + params["b1"], 0.0)
    h2 = jnp.maximum(h1 @ params["w2"] + params["b2"], 0.0)
    return h2 @ params["w3"] + params["b3"]


if __name__ == "__main__":
    state_size = 8
    action_size = 4

    key = jax.random.PRNGKey(0)
    k_params, k_state, k_state_big = jax.random.split(key, 3)

    params = init_params(k_params, state_size, action_size)
    kparams = prepare_params(params)

    # Small case (matches DQN action selection): batch=2.
    state = jax.random.normal(k_state, (2, state_size), jnp.float32)
    out = jax.block_until_ready(qnetwork_forward(state, kparams))
    ref = qnetwork_reference(state, params)
    assert out.shape == (2, action_size), out.shape
    # bf16 MXU inputs with f32 accumulation -> loosened tolerance vs f32 reference.
    assert jnp.allclose(out, ref, atol=2e-2, rtol=2e-2), "mismatch vs reference (B=2)"

    # Larger, non-aligned batch exercises the tiled grid + padding path (320 rows, 2 tiles).
    state_big = jax.random.normal(k_state_big, (300, state_size), jnp.float32)
    out_big = jax.block_until_ready(qnetwork_forward(state_big, kparams))
    ref_big = qnetwork_reference(state_big, params)
    assert out_big.shape == (300, action_size), out_big.shape
    assert jnp.allclose(out_big, ref_big, atol=2e-2, rtol=2e-2), "mismatch vs reference (B=300)"

    print("KERNEL_OK")
</pallas_src>

<mosaic_0001>
module attributes {stable_mosaic.version = 11 : i64} {
  func.func @qnetwork_kernel(%arg0: i32, %arg1: memref<16x8xf32, #tpu.memory_space<vmem>>, %arg2: memref<8x128xbf16, #tpu.memory_space<vmem>>, %arg3: memref<1x128xf32, #tpu.memory_space<vmem>>, %arg4: memref<128x128xbf16, #tpu.memory_space<vmem>>, %arg5: memref<1x128xf32, #tpu.memory_space<vmem>>, %arg6: memref<128x4xbf16, #tpu.memory_space<vmem>>, %arg7: memref<1x4xf32, #tpu.memory_space<vmem>>, %arg8: memref<16x4xf32, #tpu.memory_space<vmem>>) attributes {dimension_semantics = [#tpu.dimension_semantics<parallel>], iteration_bounds = array<i64: 1>, scalar_prefetch = 0 : i64, scratch_operands = 0 : i64, tpu.core_type = #tpu.core_type<tc>, window_params = [{transform_indices = @transform_0, window_bounds = array<i64: 16, 8>}, {pipeline_mode = #tpu.pipeline_mode<synchronous>, transform_indices = @transform_1, window_bounds = array<i64: 8, 128>}, {pipeline_mode = #tpu.pipeline_mode<synchronous>, transform_indices = @transform_2, window_bounds = array<i64: 1, 128>}, {pipeline_mode = #tpu.pipeline_mode<synchronous>, transform_indices = @transform_3, window_bounds = array<i64: 128, 128>}, {pipeline_mode = #tpu.pipeline_mode<synchronous>, transform_indices = @transform_4, window_bounds = array<i64: 1, 128>}, {pipeline_mode = #tpu.pipeline_mode<synchronous>, transform_indices = @transform_5, window_bounds = array<i64: 128, 4>}, {pipeline_mode = #tpu.pipeline_mode<synchronous>, transform_indices = @transform_6, window_bounds = array<i64: 1, 4>}, {transform_indices = @transform_7, window_bounds = array<i64: 16, 4>}]} {
    %c0 = arith.constant 0 : index
    %c0_0 = arith.constant 0 : index
    %0 = vector.load %arg1[%c0, %c0_0] : memref<16x8xf32, #tpu.memory_space<vmem>>, vector<16x8xf32>
    %1 = arith.truncf %0 : vector<16x8xf32> to vector<16x8xbf16>
    %c0_1 = arith.constant 0 : index
    %c0_2 = arith.constant 0 : index
    %2 = vector.load %arg2[%c0_1, %c0_2] : memref<8x128xbf16, #tpu.memory_space<vmem>>, vector<8x128xbf16>
    %cst = arith.constant dense<0.000000e+00> : vector<16x128xf32>
    %3 = tpu.matmul %1, %2, %cst {dimension_numbers = #tpu.dot_dimension_numbers<[1], [0], [0], [1], [0, 0, 1, 1], [], []>} : vector<16x8xbf16>, vector<8x128xbf16>, vector<16x128xf32> -> vector<16x128xf32>
    %c0_3 = arith.constant 0 : index
    %c0_4 = arith.constant 0 : index
    %4 = vector.load %arg3[%c0_3, %c0_4] : memref<1x128xf32, #tpu.memory_space<vmem>>, vector<1x128xf32>
    %5 = vector.broadcast %4 : vector<1x128xf32> to vector<16x128xf32>
    %6 = arith.addf %3, %5 : vector<16x128xf32>
    %cst_5 = arith.constant 0.000000e+00 : f32
    %7 = vector.broadcast %cst_5 : f32 to vector<16x128xf32>
    %8 = arith.maximumf %6, %7 : vector<16x128xf32>
    %9 = arith.truncf %8 : vector<16x128xf32> to vector<16x128xbf16>
    %c0_6 = arith.constant 0 : index
    %c0_7 = arith.constant 0 : index
    %10 = vector.load %arg4[%c0_6, %c0_7] : memref<128x128xbf16, #tpu.memory_space<vmem>>, vector<128x128xbf16>
    %cst_8 = arith.constant dense<0.000000e+00> : vector<16x128xf32>
    %11 = tpu.matmul %9, %10, %cst_8 {dimension_numbers = #tpu.dot_dimension_numbers<[1], [0], [0], [1], [0, 0, 1, 1], [], []>} : vector<16x128xbf16>, vector<128x128xbf16>, vector<16x128xf32> -> vector<16x128xf32>
    %c0_9 = arith.constant 0 : index
    %c0_10 = arith.constant 0 : index
    %12 = vector.load %arg5[%c0_9, %c0_10] : memref<1x128xf32, #tpu.memory_space<vmem>>, vector<1x128xf32>
    %13 = vector.broadcast %12 : vector<1x128xf32> to vector<16x128xf32>
    %14 = arith.addf %11, %13 : vector<16x128xf32>
    %cst_11 = arith.constant 0.000000e+00 : f32
    %15 = vector.broadcast %cst_11 : f32 to vector<16x128xf32>
    %16 = arith.maximumf %14, %15 : vector<16x128xf32>
    %17 = arith.truncf %16 : vector<16x128xf32> to vector<16x128xbf16>
    %c0_12 = arith.constant 0 : index
    %c0_13 = arith.constant 0 : index
    %18 = vector.load %arg6[%c0_12, %c0_13] : memref<128x4xbf16, #tpu.memory_space<vmem>>, vector<128x4xbf16>
    %cst_14 = arith.constant dense<0.000000e+00> : vector<16x4xf32>
    %19 = tpu.matmul %17, %18, %cst_14 {dimension_numbers = #tpu.dot_dimension_numbers<[1], [0], [0], [1], [0, 0, 1, 1], [], []>} : vector<16x128xbf16>, vector<128x4xbf16>, vector<16x4xf32> -> vector<16x4xf32>
    %c0_15 = arith.constant 0 : index
    %c0_16 = arith.constant 0 : index
    %20 = vector.load %arg7[%c0_15, %c0_16] : memref<1x4xf32, #tpu.memory_space<vmem>>, vector<1x4xf32>
    %21 = vector.broadcast %20 : vector<1x4xf32> to vector<16x4xf32>
    %22 = arith.addf %19, %21 : vector<16x4xf32>
    %c0_17 = arith.constant 0 : index
    %c0_18 = arith.constant 0 : index
    %23 = vector.load %arg8[%c0_17, %c0_18] : memref<16x4xf32, #tpu.memory_space<vmem>>, vector<16x4xf32>
    tpu.vector_store %arg8[%c0_17, %c0_18], %22 {strides = array<i32>} : memref<16x4xf32, #tpu.memory_space<vmem>>, vector<16x4xf32>,
    return
  }
  func.func @transform_0(%arg0: i32) -> (i32, i32) {
    %c0_i32 = arith.constant 0 : i32
    %c0_i32_0 = arith.constant 0 : i32
    return %arg0, %c0_i32 : i32, i32
  }
  func.func @transform_1(%arg0: i32) -> (i32, i32) {
    %c0_i32 = arith.constant 0 : i32
    %c0_i32_0 = arith.constant 0 : i32
    %c0_i32_1 = arith.constant 0 : i32
    return %c0_i32, %c0_i32_0 : i32, i32
  }
  func.func @transform_2(%arg0: i32) -> (i32, i32) {
    %c0_i32 = arith.constant 0 : i32
    %c0_i32_0 = arith.constant 0 : i32
    %c0_i32_1 = arith.constant 0 : i32
    return %c0_i32, %c0_i32_0 : i32, i32
  }
  func.func @transform_3(%arg0: i32) -> (i32, i32) {
    %c0_i32 = arith.constant 0 : i32
    %c0_i32_0 = arith.constant 0 : i32
    %c0_i32_1 = arith.constant 0 : i32
    return %c0_i32, %c0_i32_0 : i32, i32
  }
  func.func @transform_4(%arg0: i32) -> (i32, i32) {
    %c0_i32 = arith.constant 0 : i32
    %c0_i32_0 = arith.constant 0 : i32
    %c0_i32_1 = arith.constant 0 : i32
    return %c0_i32, %c0_i32_0 : i32, i32
  }
  func.func @transform_5(%arg0: i32) -> (i32, i32) {
    %c0_i32 = arith.constant 0 : i32
    %c0_i32_0 = arith.constant 0 : i32
    %c0_i32_1 = arith.constant 0 : i32
    return %c0_i32, %c0_i32_0 : i32, i32
  }
  func.func @transform_6(%arg0: i32) -> (i32, i32) {
    %c0_i32 = arith.constant 0 : i32
    %c0_i32_0 = arith.constant 0 : i32
    %c0_i32_1 = arith.constant 0 : i32
    return %c0_i32, %c0_i32_0 : i32, i32
  }
  func.func @transform_7(%arg0: i32) -> (i32, i32) {
    %c0_i32 = arith.constant 0 : i32
    %c0_i32_0 = arith.constant 0 : i32
    return %arg0, %c0_i32 : i32, i32
  }
}

</mosaic_0001>

<llo_original>
// kernel: _qnetwork_forward_impl.1
$region0: #{_qnetwork_forward_impl.1}
  #allocation0 [shape = 'u32[]', space=smem, size = 0x4, offset = 0x4, fixed_abs, tag = 'smem constant byte address 0x4 - core index']
  #allocation1 [shape = 'u32[144,128]{1,0:T(1,128)}', space=vmem, size = 0x12000, scoped, tag = 'internal scratch']
  %s0 = inlined_call_operand.vmem [shape: f32[16,8], index: 0, kind: input, shape index: {}]
  %s1 = inlined_call_operand.vmem [shape: bf16[8,128], index: 1, kind: input, shape index: {}]
  %s2 = inlined_call_operand.vmem [shape: f32[1,128], index: 2, kind: input, shape index: {}]
  %s3 = inlined_call_operand.vmem [shape: bf16[128,128], index: 3, kind: input, shape index: {}]
  %s4 = inlined_call_operand.vmem [shape: f32[1,128], index: 4, kind: input, shape index: {}]
  %s5 = inlined_call_operand.vmem [shape: bf16[128,4], index: 5, kind: input, shape index: {}]
  %s6 = inlined_call_operand.vmem [shape: f32[1,4], index: 6, kind: input, shape index: {}]
  %s7 = inlined_call_operand.vmem [shape: f32[16,4], index: 7, kind: output, shape index: {}]
  %s8 = sld [smem:[#allocation0]]
  $region38: #{_qnetwork_forward_impl.1} parent=0
    _
  %s10 = ssub.s32 1, %s8
  %s11 = scalar_select 0, %s10, %s8
  // Predicated region
  $region2: #{_qnetwork_forward_impl.1} parent=0 // pred_check
    _
  $region3: #{_qnetwork_forward_impl.1} parent=0 // pred_check_branch
    %13 = sbr.rel (0) target = $region5
  $region4: #{_qnetwork_forward_impl.1} parent=0 // pred_region
    _
  $region5: #{_qnetwork_forward_impl.1} parent=0 // pred_fallthru
    _
  // Predicated region
  $region6: #{_qnetwork_forward_impl.1} parent=0 // pred_check
    _
  $region7: #{_qnetwork_forward_impl.1} parent=0 // pred_check_branch
    %15 = sbr.rel (0) target = $region9
  $region8: #{_qnetwork_forward_impl.1} parent=0 // pred_region
    _
  $region9: #{_qnetwork_forward_impl.1} parent=0 // pred_fallthru
    _
  // Predicated region
  $region10: #{_qnetwork_forward_impl.1} parent=0 // pred_check
    _
  $region11: #{_qnetwork_forward_impl.1} parent=0 // pred_check_branch
    %17 = sbr.rel (0) target = $region13
  $region12: #{_qnetwork_forward_impl.1} parent=0 // pred_region
    _
  $region13: #{_qnetwork_forward_impl.1} parent=0 // pred_fallthru
    _
  // Predicated region
  $region14: #{_qnetwork_forward_impl.1} parent=0 // pred_check
    _
  $region15: #{_qnetwork_forward_impl.1} parent=0 // pred_check_branch
    %19 = sbr.rel (0) target = $region17
  $region16: #{_qnetwork_forward_impl.1} parent=0 // pred_region
    _
  $region17: #{_qnetwork_forward_impl.1} parent=0 // pred_fallthru
    _
  // Predicated region
  $region18: #{_qnetwork_forward_impl.1} parent=0 // pred_check
    _
  $region19: #{_qnetwork_forward_impl.1} parent=0 // pred_check_branch
    %21 = sbr.rel (0) target = $region21
  $region20: #{_qnetwork_forward_impl.1} parent=0 // pred_region
    _
  $region21: #{_qnetwork_forward_impl.1} parent=0 // pred_fallthru
    _
  // Predicated region
  $region22: #{_qnetwork_forward_impl.1} parent=0 // pred_check
    _
  $region23: #{_qnetwork_forward_impl.1} parent=0 // pred_check_branch
    %23 = sbr.rel (0) target = $region25
  $region24: #{_qnetwork_forward_impl.1} parent=0 // pred_region
    _
  $region25: #{_qnetwork_forward_impl.1} parent=0 // pred_fallthru
    _
  // Predicated region
  $region26: #{_qnetwork_forward_impl.1} parent=0 // pred_check
    _
  $region27: #{_qnetwork_forward_impl.1} parent=0 // pred_check_branch
    %25 = sbr.rel (0) target = $region29
  $region28: #{_qnetwork_forward_impl.1} parent=0 // pred_region
    _
  $region29: #{_qnetwork_forward_impl.1} parent=0 // pred_fallthru
    _
  %v27 = vld [vmem:[%s0] sm:$0xff]
  %v28 = vld [vmem:[%s0 + $0x8] sm:$0xff]
  %v29 = vpack.c.bf16 %v28, %v27
  %v30 = vld [vmem:[%s1] sm:$0xf]
  %v31 = vld [vmem:[%s2] sm:$0x1]
  %v33 = vlaneseq
  %v34 = vshrl.u32 %v33, 7
  %v35 = vsub.s32 0, %v34
  %v36 = vrot.slane %v31, %v35
  %vm38 = vcmask 64512
  %v40 = vsel %vm38, %v29, 0
  %vm42 = vcmask 1043456
  %v44 = vsel %vm42, %v30, 0
  %46 = vmatprep.subr.bf16.mxu0 0
  %47 = vmatpush1.bf16.msra.mxu0 0
  %48 = vmatprep.subr.bf16.mxu0 0
  %49 = vmatpush1.bf16.msra.mxu0 0
  %50 = vmatprep.subr.bf16.mxu0 0
  %51 = vmatpush1.bf16.msra.mxu0 0
  %52 = vmatprep.subr.bf16.mxu0 0
  %53 = vmatpush1.bf16.msra.mxu0 0
  %54 = vmatprep.subr.bf16.mxu0 0
  %55 = vmatpush1.bf16.msra.mxu0 0
  %56 = vmatprep.subr.bf16.mxu0 0
  %57 = vmatpush1.bf16.msra.mxu0 0
  %58 = vmatprep.subr.bf16.mxu0 0
  %59 = vmatpush1.bf16.msra.mxu0 0
  %60 = vmatprep.subr.bf16.mxu0 0
  %61 = vmatpush1.bf16.msra.mxu0 %v44
  %62 = vmatprep.subr.bf16.mxu0 0
  %63 = vmatpush2.bf16.msra.mxu0 0
  %64 = vmatprep.subr.bf16.mxu0 0
  %65 = vmatpush2.bf16.msra.mxu0 0
  %66 = vmatprep.subr.bf16.mxu0 0
  %67 = vmatpush2.bf16.msra.mxu0 0
  %68 = vmatprep.subr.bf16.mxu0 0
  %69 = vmatpush2.bf16.msra.mxu0 0
  %70 = vmatprep.subr.bf16.mxu0 0
  %71 = vmatpush2.bf16.msra.mxu0 0
  %72 = vmatprep.subr.bf16.mxu0 0
  %73 = vmatpush2.bf16.msra.mxu0 0
  %74 = vmatprep.subr.bf16.mxu0 0
  %75 = vmatpush2.bf16.msra.mxu0 0
  %76 = vmatprep.subr.bf16.mxu0 0
  %77 = vmatpush2.bf16.msra.mxu0 0
  %78 = vmatprep.mubr.bf16.mxu0 0
  %79 = vmatmul.mubr.bf16.gmra.mxu0 %v40
  %v80 = vpop.f32.mrf.mxu0
  %v81 = vadd.f32 %v36, %v80
  %v82 = vpop.f32.mrf.mxu0
  %v83 = vpop.f32.mrf.mxu0
  %v84 = vadd.f32 %v36, %v83
  %v85 = vpop.f32.mrf.mxu0
  %86 = vdwg.mxu0
  %v87 = vmax.f32 %v81, 0.0
  %v88 = vmax.f32 %v84, 0.0
  %v89 = vpack.c.bf16 %v88, %v87
  %v90 = vld [vmem:[%s3] sm:$0xf]
  %v91 = vld [vmem:[%s3 + $0x4] sm:$0xf]
  %v92 = vld [vmem:[%s3 + $0x8] sm:$0xf]
  %v93 = vld [vmem:[%s3 + $0xc] sm:$0xf]
  %v94 = vld [vmem:[%s3 + $0x10] sm:$0xf]
  %v95 = vld [vmem:[%s3 + $0x14] sm:$0xf]
  %v96 = vld [vmem:[%s3 + $0x18] sm:$0xf]
  %v97 = vld [vmem:[%s3 + $0x1c] sm:$0xf]
  %v98 = vld [vmem:[%s3 + $0x20] sm:$0xf]
  %v99 = vld [vmem:[%s3 + $0x24] sm:$0xf]
  %v100 = vld [vmem:[%s3 + $0x28] sm:$0xf]
  %v101 = vld [vmem:[%s3 + $0x2c] sm:$0xf]
  %v102 = vld [vmem:[%s3 + $0x30] sm:$0xf]
  %v103 = vld [vmem:[%s3 + $0x34] sm:$0xf]
  %v104 = vld [vmem:[%s3 + $0x38] sm:$0xf]
  %v105 = vld [vmem:[%s3 + $0x3c] sm:$0xf]
  %v106 = vld [vmem:[%s4] sm:$0x1]
  %v108 = vlaneseq
  %v109 = vshrl.u32 %v108, 7
  %v110 = vsub.s32 0, %v109
  %v111 = vrot.slane %v106, %v110
  %v129 = vunpack.c.l.b16 %v90
  %v130 = vunpack.c.l.b16 %v91
  %v131 = vunpack.c.l.b16 %v92
  %v132 = vunpack.c.l.b16 %v93
  %v133 = vunpack.c.l.b16 %v94
  %v134 = vunpack.c.l.b16 %v95
  %v135 = vunpack.c.l.b16 %v96
  %v136 = vunpack.c.l.b16 %v97
  %v137 = vunpack.c.l.b16 %v98
  %v138 = vunpack.c.l.b16 %v99
  %v139 = vunpack.c.l.b16 %v100
  %v140 = vunpack.c.l.b16 %v101
  %v141 = vunpack.c.l.b16 %v102
  %v142 = vunpack.c.l.b16 %v103
  %v143 = vunpack.c.l.b16 %v104
  %v144 = vunpack.c.l.b16 %v105
  %v145 = vpack.c.b16 %v130, %v129
  %v146 = vpack.c.b16 %v132, %v131
  %v147 = vpack.c.b16 %v134, %v133
  %v148 = vpack.c.b16 %v136, %v135
  %v149 = vpack.c.b16 %v138, %v137
  %v150 = vpack.c.b16 %v140, %v139
  %v151 = vpack.c.b16 %v142, %v141
  %v152 = vpack.c.b16 %v144, %v143
  %161 = vmatprep.subr.bf16.mxu0 0
  %162 = vmatpush1.bf16.msra.mxu0 %v152
  %163 = vmatprep.subr.bf16.mxu0 0
  %164 = vmatpush1.bf16.msra.mxu0 %v151
  %165 = vmatprep.subr.bf16.mxu0 0
  %166 = vmatpush1.bf16.msra.mxu0 %v150
  %167 = vmatprep.subr.bf16.mxu0 0
  %168 = vmatpush1.bf16.msra.mxu0 %v149
  %169 = vmatprep.subr.bf16.mxu0 0
  %170 = vmatpush1.bf16.msra.mxu0 %v148
  %171 = vmatprep.subr.bf16.mxu0 0
  %172 = vmatpush1.bf16.msra.mxu0 %v147
  %173 = vmatprep.subr.bf16.mxu0 0
  %174 = vmatpush1.bf16.msra.mxu0 %v146
  %175 = vmatprep.subr.bf16.mxu0 0
  %176 = vmatpush1.bf16.msra.mxu0 %v145
  %177 = vmatprep.subr.bf16.mxu0 0
  %178 = vmatpush2.bf16.msra.mxu0 0
  %179 = vmatprep.subr.bf16.mxu0 0
  %180 = vmatpush2.bf16.msra.mxu0 0
  %181 = vmatprep.subr.bf16.mxu0 0
  %182 = vmatpush2.bf16.msra.mxu0 0
  %183 = vmatprep.subr.bf16.mxu0 0
  %184 = vmatpush2.bf16.msra.mxu0 0
  %185 = vmatprep.subr.bf16.mxu0 0
  %186 = vmatpush2.bf16.msra.mxu0 0
  %187 = vmatprep.subr.bf16.mxu0 0
  %188 = vmatpush2.bf16.msra.mxu0 0
  %189 = vmatprep.subr.bf16.mxu0 0
  %190 = vmatpush2.bf16.msra.mxu0 0
  %191 = vmatprep.subr.bf16.mxu0 0
  %192 = vmatpush2.bf16.msra.mxu0 0
  %193 = vmatprep.mubr.bf16.mxu0 0
  %194 = vmatmul.mubr.bf16.gmra.mxu0 %v89
  %v195 = vpop.f32.mrf.mxu0
  %v196 = vadd.f32 %v111, %v195
  %v197 = vpop.f32.mrf.mxu0
  %v198 = vpop.f32.mrf.mxu0
  %v199 = vadd.f32 %v111, %v198
  %v200 = vpop.f32.mrf.mxu0
  %201 = vdwg.mxu0
  %v202 = vmax.f32 %v196, 0.0
  %v203 = vmax.f32 %v199, 0.0
  %v204 = vpack.c.bf16 %v203, %v202
  %v205 = vld [vmem:[%s5] sm:$0xf]
  %v206 = vld [vmem:[%s5 + $0x4] sm:$0xf]
  %v207 = vld [vmem:[%s5 + $0x8] sm:$0xf]
  %v208 = vld [vmem:[%s5 + $0xc] sm:$0xf]
  %v209 = vld [vmem:[%s5 + $0x10] sm:$0xf]
  %v210 = vld [vmem:[%s5 + $0x14] sm:$0xf]
  %v211 = vld [vmem:[%s5 + $0x18] sm:$0xf]
  %v212 = vld [vmem:[%s5 + $0x1c] sm:$0xf]
  %v213 = vld [vmem:[%s5 + $0x20] sm:$0xf]
  %v214 = vld [vmem:[%s5 + $0x24] sm:$0xf]
  %v215 = vld [vmem:[%s5 + $0x28] sm:$0xf]
  %v216 = vld [vmem:[%s5 + $0x2c] sm:$0xf]
  %v217 = vld [vmem:[%s5 + $0x30] sm:$0xf]
  %v218 = vld [vmem:[%s5 + $0x34] sm:$0xf]
  %v219 = vld [vmem:[%s5 + $0x38] sm:$0xf]
  %v220 = vld [vmem:[%s5 + $0x3c] sm:$0xf]
  %v221 = vld [vmem:[%s6] sm:$0x1]
  %v223 = vlaneseq
  %v224 = vshrl.u32 %v223, 7
  %v225 = vsub.s32 0, %v224
  %v226 = vrot.slane %v221, %v225
  %v244 = vunpack.c.l.b16 %v205
  %v245 = vunpack.c.l.b16 %v206
  %v246 = vunpack.c.l.b16 %v207
  %v247 = vunpack.c.l.b16 %v208
  %v248 = vunpack.c.l.b16 %v209
  %v249 = vunpack.c.l.b16 %v210
  %v250 = vunpack.c.l.b16 %v211
  %v251 = vunpack.c.l.b16 %v212
  %v252 = vunpack.c.l.b16 %v213
  %v253 = vunpack.c.l.b16 %v214
  %v254 = vunpack.c.l.b16 %v215
  %v255 = vunpack.c.l.b16 %v216
  %v256 = vunpack.c.l.b16 %v217
  %v257 = vunpack.c.l.b16 %v218
  %v258 = vunpack.c.l.b16 %v219
  %v259 = vunpack.c.l.b16 %v220
  %v260 = vpack.c.b16 %v245, %v244
  %v261 = vpack.c.b16 %v247, %v246
  %v262 = vpack.c.b16 %v249, %v248
  %v263 = vpack.c.b16 %v251, %v250
  %v264 = vpack.c.b16 %v253, %v252
  %v265 = vpack.c.b16 %v255, %v254
  %v266 = vpack.c.b16 %v257, %v256
  %v267 = vpack.c.b16 %v259, %v258
  %276 = vmatprep.subr.bf16.mxu0 0
  %277 = vmatpush1.bf16.msra.mxu0 %v267
  %278 = vmatprep.subr.bf16.mxu0 0
  %279 = vmatpush1.bf16.msra.mxu0 %v266
  %280 = vmatprep.subr.bf16.mxu0 0
  %281 = vmatpush1.bf16.msra.mxu0 %v265
  %282 = vmatprep.subr.bf16.mxu0 0
  %283 = vmatpush1.bf16.msra.mxu0 %v264
  %284 = vmatprep.subr.bf16.mxu0 0
  %285 = vmatpush1.bf16.msra.mxu0 %v263
  %286 = vmatprep.subr.bf16.mxu0 0
  %287 = vmatpush1.bf16.msra.mxu0 %v262
  %288 = vmatprep.subr.bf16.mxu0 0
  %289 = vmatpush1.bf16.msra.mxu0 %v261
  %290 = vmatprep.subr.bf16.mxu0 0
  %291 = vmatpush1.bf16.msra.mxu0 %v260
  %292 = vmatprep.subr.bf16.mxu0 0
  %293 = vmatpush2.bf16.msra.mxu0 0
  %294 = vmatprep.subr.bf16.mxu0 0
  %295 = vmatpush2.bf16.msra.mxu0 0
  %296 = vmatprep.subr.bf16.mxu0 0
  %297 = vmatpush2.bf16.msra.mxu0 0
  %298 = vmatprep.subr.bf16.mxu0 0
  %299 = vmatpush2.bf16.msra.mxu0 0
  %300 = vmatprep.subr.bf16.mxu0 0
  %301 = vmatpush2.bf16.msra.mxu0 0
  %302 = vmatprep.subr.bf16.mxu0 0
  %303 = vmatpush2.bf16.msra.mxu0 0
  %304 = vmatprep.subr.bf16.mxu0 0
  %305 = vmatpush2.bf16.msra.mxu0 0
  %306 = vmatprep.subr.bf16.mxu0 0
  %307 = vmatpush2.bf16.msra.mxu0 0
  %308 = vmatprep.mubr.bf16.mxu0 0
  %309 = vmatmul.mubr.bf16.gmra.mxu0 %v204
  %v310 = vpop.f32.mrf.mxu0
  %v311 = vadd.f32 %v226, %v310
  %v312 = vpop.f32.mrf.mxu0
  %v313 = vpop.f32.mrf.mxu0
  %v314 = vadd.f32 %v226, %v313
  %v315 = vpop.f32.mrf.mxu0
  %316 = vdwg.mxu0
  %vm317 = vcmask 31744
  %318 = vst.msk [vmem:[%s7] sm:$0xff] %vm317, %v311
  %319 = vst.msk [vmem:[%s7 + $0x8] sm:$0xff] %vm317, %v314
  // Predicated region
  $region30: #{_qnetwork_forward_impl.1} parent=0 // pred_check
    _
  $region31: #{_qnetwork_forward_impl.1} parent=0 // pred_check_branch
    %321 = sbr.rel (0) target = $region33
  $region32: #{_qnetwork_forward_impl.1} parent=0 // pred_region
    _
  $region33: #{_qnetwork_forward_impl.1} parent=0 // pred_fallthru
    _
  // Predicated region
  $region34: #{_qnetwork_forward_impl.1} parent=0 // pred_check
    _
  $region35: #{_qnetwork_forward_impl.1} parent=0 // pred_check_branch
    %323 = sbr.rel (0) target = $region37
  $region36: #{_qnetwork_forward_impl.1} parent=0 // pred_region
    _
  $region37: #{_qnetwork_forward_impl.1} parent=0 // pred_fallthru
    _

</llo_original>
